<compile_context>
chip_gen: v6e
topology: v6e:2x2x1
jax: 0.10.0
libtpu: 0.0.40
codegen_flags: <defaults>
</compile_context>

<pallas_src>
import jax
import jax.numpy as jnp
from jax.experimental import pallas as pl
from jax.experimental.pallas import tpu as pltpu

_NORM_EPS = 1e-12                      # F.normalize default eps
_NORM_EPS_SQ = _NORM_EPS * _NORM_EPS


def _round_up(a: int, b: int) -> int:
    return (a + b - 1) // b * b


# ---------------------------------------------------------------------------
# Pre-pass: per-row raw scale (x @ scale_w.T) and inverse L2 norm of x rows.
# ---------------------------------------------------------------------------
def _row_stats_kernel(x_ref, sw_ref, raw_ref, xinv_ref):
    x = x_ref[...].astype(jnp.float32)                        # (tm, D)
    sw = sw_ref[...].astype(jnp.float32)                      # (1, D)
    raw_ref[...] = jnp.sum(x * sw, axis=-1, keepdims=True)    # (tm, 1)
    sumsq = jnp.sum(x * x, axis=-1, keepdims=True)            # (tm, 1)
    # 1 / max(||x||, eps)  ==  rsqrt(max(sum(x^2), eps^2))    (EUP rsqrt)
    xinv_ref[...] = jax.lax.rsqrt(jnp.maximum(sumsq, _NORM_EPS_SQ))


# ---------------------------------------------------------------------------
# Main kernel: out[i,j] = exp_scale[i] * xinv[i] * winv[j] * sum_k x[i,k]*w[j,k]
# ---------------------------------------------------------------------------
def _cosine_scale_kernel(x_ref, w_ref, se_ref, xinv_ref, winv_ref,
                         out_ref, acc_ref):
    k = pl.program_id(2)

    @pl.when(k == 0)
    def _():
        acc_ref[...] = jnp.zeros_like(acc_ref)

    # Contract the last (lane) axis of both tiles: (tm,tk) x (tn,tk) -> (tm,tn).
    acc_ref[...] += jax.lax.dot_general(
        x_ref[...], w_ref[...],
        dimension_numbers=(((1,), (1,)), ((), ())),
        preferred_element_type=jnp.float32)

    @pl.when(k == pl.num_programs(2) - 1)
    def _():
        row_scale = se_ref[...] * xinv_ref[...]                # (tm, 1)
        out_ref[...] = (acc_ref[...] * row_scale
                        * winv_ref[...]).astype(out_ref.dtype)


def cosine_scaling(x, fc_w, scale_w, *,
                   bn_gamma=1.0, bn_beta=0.0, bn_eps=1e-5,
                   bn_running_mean=0.0, bn_running_var=1.0,
                   training=True):
    """Forward pass of CosineScaling.

    x:       (B, D) input features
    fc_w:    (C, D) end_linear weight (cosine "centers")
    scale_w: (1, D) scale_linear weight (bias=False)
    """
    B, D = x.shape
    C, Dw = fc_w.shape
    assert Dw == D and scale_w.shape == (1, D)
    out_dtype = x.dtype

    # -- tile selection (lane-dense; double-buffered footprint is a few MiB,
    #    well inside the 32 MiB scoped-VMEM default on v5e/v6e/v7x) --
    if B <= 256:
        Bp = _round_up(B, 8); tm = Bp
    else:
        tm = 256; Bp = _round_up(B, tm)
    if C <= 256:
        Cp = C; tn = C
    else:
        tn = 256; Cp = _round_up(C, tn)
    if D <= 1024:
        Dp = D; tk = D
    else:
        tk = 512; Dp = _round_up(D, tk)

    xp = jnp.pad(x, ((0, Bp - B), (0, Dp - D)))
    wp = jnp.pad(fc_w, ((0, Cp - C), (0, Dp - D)))
    swp = jnp.pad(scale_w, ((0, 0), (0, Dp - D)))

    # -- pre-pass over B tiles: raw scale matvec + per-row inverse norms --
    if B <= 256:
        tm_pre = Bp
    else:
        tm_pre = tm
        while tm_pre > 8 and tm_pre * Dp * 4 > (4 << 20):  # keep x block <= ~4 MiB
            tm_pre //= 2
    raw_p, xinv_p = pl.pallas_call(
        _row_stats_kernel,
        out_shape=(jax.ShapeDtypeStruct((Bp, 1), jnp.float32),
                   jax.ShapeDtypeStruct((Bp, 1), jnp.float32)),
        grid_spec=pltpu.PrefetchScalarGridSpec(
            num_scalar_prefetch=0,
            grid=(Bp // tm_pre,),
            in_specs=[pl.BlockSpec((tm_pre, Dp), lambda i: (i, 0)),
                      pl.BlockSpec((1, Dp), lambda i: (0, 0))],
            out_specs=[pl.BlockSpec((tm_pre, 1), lambda i: (i, 0)),
                       pl.BlockSpec((tm_pre, 1), lambda i: (i, 0))]),
        compiler_params=pltpu.CompilerParams(
            dimension_semantics=("parallel",)),
    )(xp, swp)

    # -- BatchNorm1d(1) + exp on the (B, 1) scale --
    # TODO(synk): BatchNorm1d batch statistics require a global reduction across
    # all B tiles; this O(B) step is kept in plain JAX between the two kernels.
    raw = raw_p[:B]
    if training:
        mean = jnp.mean(raw)
        var = jnp.mean(jnp.square(raw - mean))     # biased var, as BN uses
    else:
        mean = jnp.asarray(bn_running_mean, jnp.float32)
        var = jnp.asarray(bn_running_var, jnp.float32)
    scale = bn_gamma * (raw - mean) * jax.lax.rsqrt(var + bn_eps) + bn_beta
    scale_exp = jnp.exp(scale)                                       # (B, 1)
    scale_p = jnp.pad(scale_exp, ((0, Bp - B), (0, 0)))

    # -- weight inverse norms: reused parameter -> hoisted out of the kernel --
    w_sumsq = jnp.sum(fc_w.astype(jnp.float32) ** 2, axis=-1)        # (C,)
    w_inv = jax.lax.rsqrt(jnp.maximum(w_sumsq, _NORM_EPS_SQ))
    winv_p = jnp.pad(w_inv, (0, Cp - C)).reshape(1, Cp)

    out_p = pl.pallas_call(
        _cosine_scale_kernel,
        out_shape=jax.ShapeDtypeStruct((Bp, Cp), out_dtype),
        grid_spec=pltpu.PrefetchScalarGridSpec(
            num_scalar_prefetch=0,
            grid=(Bp // tm, Cp // tn, Dp // tk),
            in_specs=[pl.BlockSpec((tm, tk), lambda i, j, k: (i, k)),
                      pl.BlockSpec((tn, tk), lambda i, j, k: (j, k)),
                      pl.BlockSpec((tm, 1), lambda i, j, k: (i, 0)),
                      pl.BlockSpec((tm, 1), lambda i, j, k: (i, 0)),
                      pl.BlockSpec((1, tn), lambda i, j, k: (0, j))],
            out_specs=pl.BlockSpec((tm, tn), lambda i, j, k: (i, j)),
            scratch_shapes=[pltpu.VMEM((tm, tn), jnp.float32)]),
        compiler_params=pltpu.CompilerParams(
            dimension_semantics=("parallel", "parallel", "arbitrary")),
    )(xp, wp, scale_p, xinv_p, winv_p)

    return out_p[:B, :C]


if __name__ == "__main__":
    in_features, out_features, batch = 32, 16, 8
    key = jax.random.PRNGKey(0)
    kx, kw, ks = jax.random.split(key, 3)
    x = jax.random.normal(kx, (batch, in_features), dtype=jnp.float32)
    fc_w = jax.random.normal(kw, (out_features, in_features), dtype=jnp.float32)
    bound = 1.0 / (in_features ** 0.5)
    scale_w = jax.random.uniform(ks, (1, in_features), jnp.float32,
                                 minval=-bound, maxval=bound)

    out = jax.block_until_ready(cosine_scaling(x, fc_w, scale_w))

    # Plain-JAX reference of the PyTorch forward (fresh module -> train-mode BN
    # with gamma=1, beta=0, eps=1e-5; F.normalize eps=1e-12).
    raw = x @ scale_w.T
    mean = jnp.mean(raw)
    var = jnp.mean(jnp.square(raw - mean))
    scale_ref = jnp.exp((raw - mean) / jnp.sqrt(var + 1e-5))
    xn = x / jnp.maximum(jnp.linalg.norm(x, axis=-1, keepdims=True), 1e-12)
    wn = fc_w / jnp.maximum(jnp.linalg.norm(fc_w, axis=-1, keepdims=True), 1e-12)
    ref = scale_ref * (xn @ wn.T)

    assert out.shape == (batch, out_features)
    assert jnp.allclose(out, ref, atol=1e-4, rtol=1e-4), (
        f"max abs err = {jnp.max(jnp.abs(out - ref))}")
    print("KERNEL_OK")
</pallas_src>

<mosaic_0001>
module attributes {stable_mosaic.version = 11 : i64} {
  func.func @_row_stats_kernel(%arg0: i32, %arg1: memref<8x32xf32, #tpu.memory_space<vmem>>, %arg2: memref<1x32xf32, #tpu.memory_space<vmem>>, %arg3: memref<8x1xf32, #tpu.memory_space<vmem>>, %arg4: memref<8x1xf32, #tpu.memory_space<vmem>>) attributes {dimension_semantics = [#tpu.dimension_semantics<parallel>], iteration_bounds = array<i64: 1>, scalar_prefetch = 0 : i64, scratch_operands = 0 : i64, tpu.core_type = #tpu.core_type<tc>, window_params = [{transform_indices = @transform_0, window_bounds = array<i64: 8, 32>}, {pipeline_mode = #tpu.pipeline_mode<synchronous>, transform_indices = @transform_1, window_bounds = array<i64: 1, 32>}, {transform_indices = @transform_2, window_bounds = array<i64: 8, 1>}, {transform_indices = @transform_3, window_bounds = array<i64: 8, 1>}]} {
    %c0 = arith.constant 0 : index
    %c0_0 = arith.constant 0 : index
    %0 = vector.load %arg1[%c0, %c0_0] : memref<8x32xf32, #tpu.memory_space<vmem>>, vector<8x32xf32>
    %c0_1 = arith.constant 0 : index
    %c0_2 = arith.constant 0 : index
    %1 = vector.load %arg2[%c0_1, %c0_2] : memref<1x32xf32, #tpu.memory_space<vmem>>, vector<1x32xf32>
    %2 = vector.broadcast %1 : vector<1x32xf32> to vector<8x32xf32>
    %3 = arith.mulf %0, %2 : vector<8x32xf32>
    %cst = arith.constant dense<0.000000e+00> : vector<8xf32>
    %4 = vector.multi_reduction <add>, %3, %cst [1] : vector<8x32xf32> to vector<8xf32>
    %5 = vector.shape_cast %4 : vector<8xf32> to vector<8x1xf32>
    %c0_3 = arith.constant 0 : index
    %c0_4 = arith.constant 0 : index
    %6 = vector.load %arg3[%c0_3, %c0_4] : memref<8x1xf32, #tpu.memory_space<vmem>>, vector<8x1xf32>
    tpu.vector_store %arg3[%c0_3, %c0_4], %5 {strides = array<i32>} : memref<8x1xf32, #tpu.memory_space<vmem>>, vector<8x1xf32>,
    %7 = arith.mulf %0, %0 : vector<8x32xf32>
    %cst_5 = arith.constant dense<0.000000e+00> : vector<8xf32>
    %8 = vector.multi_reduction <add>, %7, %cst_5 [1] : vector<8x32xf32> to vector<8xf32>
    %9 = vector.shape_cast %8 : vector<8xf32> to vector<8x1xf32>
    %cst_6 = arith.constant 1.000000e-24 : f32
    %10 = vector.broadcast %cst_6 : f32 to vector<8x1xf32>
    %11 = arith.maximumf %9, %10 : vector<8x1xf32>
    %12 = math.rsqrt %11 : vector<8x1xf32>
    %c0_7 = arith.constant 0 : index
    %c0_8 = arith.constant 0 : index
    %13 = vector.load %arg4[%c0_7, %c0_8] : memref<8x1xf32, #tpu.memory_space<vmem>>, vector<8x1xf32>
    tpu.vector_store %arg4[%c0_7, %c0_8], %12 {strides = array<i32>} : memref<8x1xf32, #tpu.memory_space<vmem>>, vector<8x1xf32>,
    return
  }
  func.func @transform_0(%arg0: i32) -> (i32, i32) {
    %c0_i32 = arith.constant 0 : i32
    %c0_i32_0 = arith.constant 0 : i32
    return %arg0, %c0_i32 : i32, i32
  }
  func.func @transform_1(%arg0: i32) -> (i32, i32) {
    %c0_i32 = arith.constant 0 : i32
    %c0_i32_0 = arith.constant 0 : i32
    %c0_i32_1 = arith.constant 0 : i32
    return %c0_i32, %c0_i32_0 : i32, i32
  }
  func.func @transform_2(%arg0: i32) -> (i32, i32) {
    %c0_i32 = arith.constant 0 : i32
    %c0_i32_0 = arith.constant 0 : i32
    return %arg0, %c0_i32 : i32, i32
  }
  func.func @transform_3(%arg0: i32) -> (i32, i32) {
    %c0_i32 = arith.constant 0 : i32
    %c0_i32_0 = arith.constant 0 : i32
    return %arg0, %c0_i32 : i32, i32
  }
}

</mosaic_0001>

<llo_original>
// kernel: tpu_custom_call.1
$region0: #{tpu_custom_call.1}
  #allocation0 [shape = 'u32[]', space=smem, size = 0x4, offset = 0x4, fixed_abs, tag = 'smem constant byte address 0x4 - core index']
  #allocation1 [shape = 'u32[144,128]{1,0:T(1,128)}', space=vmem, size = 0x12000, scoped, tag = 'internal scratch']
  %s0 = inlined_call_operand.hbm [shape: f32[8,32], index: 0, kind: input, shape index: {}]
  %s1 = inlined_call_operand.vmem [shape: f32[1,32], index: 1, kind: input, shape index: {}]
  %s2 = inlined_call_operand.vmem [shape: f32[8,1], index: 2, kind: output, shape index: {0}]
  %s3 = inlined_call_operand.vmem [shape: f32[8,1], index: 3, kind: output, shape index: {1}]
  %4 = xla_tuple %s2, %s3
  %s5 = sld [smem:[#allocation0]]
  $region30: #{tpu_custom_call.1} parent=0
    _
  %s7 = ssub.s32 1, %s5
  %s8 = scalar_select 0, %s7, %s5
  $region1: #{tpu_custom_call.1} parent=0
    #allocation2 [shape = 'u8[4096]{0}', space=vmem, size = 0x1000, scoped, tag = 'input window, operand 0, single buffered']
    #allocation3 [shape = 's32[1]{0}', space=sflag, size = 0x4, scoped, tag = 'scoped memory for tpu_custom_call.1']
    %9 = vsyncpa [#allocation3], 0
    // Predicated region
    $region2: #{tpu_custom_call.1} parent=1 // pred_check
      _
    $region3: #{tpu_custom_call.1} parent=1 // pred_check_branch
      %11 = sbr.rel (0) target = $region5
    $region4: #{tpu_custom_call.1} parent=1 // pred_region
      %s13 = ssub.s32 128, 128
      %14 = vsyncadd [#allocation3], %s13
      %s16 = sshll.u32 [#allocation2], 4
      %s17 = int_to_ptr.vmem [resolvable:$true] %s16
      %19 = dma.hbm_to_vmem [thread:$0]  %s0, 128, %s17, [#allocation3]
    $region5: #{tpu_custom_call.1} parent=1 // pred_fallthru
      _
    // Predicated region
    $region6: #{tpu_custom_call.1} parent=1 // pred_check
      _
    $region7: #{tpu_custom_call.1} parent=1 // pred_check_branch
      %21 = sbr.rel (0) target = $region9
    $region8: #{tpu_custom_call.1} parent=1 // pred_region
      _
    $region9: #{tpu_custom_call.1} parent=1 // pred_fallthru
      _
    // Predicated region
    $region10: #{tpu_custom_call.1} parent=1 // pred_check
      _
    $region11: #{tpu_custom_call.1} parent=1 // pred_check_branch
      %23 = sbr.rel (0) target = $region13
    $region12: #{tpu_custom_call.1} parent=1 // pred_region
      %24 = dma.done [#allocation3], 128
    $region13: #{tpu_custom_call.1} parent=1 // pred_fallthru
      _
    %v25 = vld [vmem:[#allocation2] sm:$0xff]
    %v26 = vld [vmem:[%s1] sm:$0x1]
    %v28 = vlaneseq
    %v29 = vshrl.u32 %v28, 7
    %v30 = vsub.s32 0, %v29
    %v31 = vrot.slane %v26, %v30
    %v33 = vmul.f32 %v25, %v31
    %vm34 = vcmask 261120
    %v35 = vsel %vm34, %v33, 0.0
    %36 = vadd.xlane.f32.xlu0 %v35
    %v37 = vpop.xlane.xlu0 %36
    %vm38 = vcmask 7168
    %39 = vst.msk [vmem:[%s2] sm:$0xff] %vm38, %v37
    %v40 = vmul.f32 %v25, %v25
    %v41 = vsel %vm34, %v40, 0.0
    %42 = vadd.xlane.f32.xlu0 %v41
    %v43 = vpop.xlane.xlu0 %42
    %v44 = vmax.f32 %v43, 1e-24
    %v45 = vrsqrt.pop %v44
    %46 = vst.msk [vmem:[%s3] sm:$0xff] %vm38, %v45
    // Predicated region
    $region14: #{tpu_custom_call.1} parent=1 // pred_check
      _
    $region15: #{tpu_custom_call.1} parent=1 // pred_check_branch
      %48 = sbr.rel (0) target = $region17
    $region16: #{tpu_custom_call.1} parent=1 // pred_region
      _
    $region17: #{tpu_custom_call.1} parent=1 // pred_fallthru
      _
    // Predicated region
    $region18: #{tpu_custom_call.1} parent=1 // pred_check
      _
    $region19: #{tpu_custom_call.1} parent=1 // pred_check_branch
      %50 = sbr.rel (0) target = $region21
    $region20: #{tpu_custom_call.1} parent=1 // pred_region
      _
    $region21: #{tpu_custom_call.1} parent=1 // pred_fallthru
      _
    // Predicated region
    $region22: #{tpu_custom_call.1} parent=1 // pred_check
      _
    $region23: #{tpu_custom_call.1} parent=1 // pred_check_branch
      %52 = sbr.rel (0) target = $region25
    $region24: #{tpu_custom_call.1} parent=1 // pred_region
      _
    $region25: #{tpu_custom_call.1} parent=1 // pred_fallthru
      _
    // Predicated region
    $region26: #{tpu_custom_call.1} parent=1 // pred_check
      _
    $region27: #{tpu_custom_call.1} parent=1 // pred_check_branch
      %54 = sbr.rel (0) target = $region29
    $region28: #{tpu_custom_call.1} parent=1 // pred_region
      _
    $region29: #{tpu_custom_call.1} parent=1 // pred_fallthru
      _
    %55 = vsyncpa [#allocation3], 1

</llo_original>
